<compile_context>
chip_gen: v6e
topology: v6e:2x2x1
jax: 0.10.0
libtpu: 0.0.40
codegen_flags: <defaults>
</compile_context>

<pallas_src>
import jax
import jax.numpy as jnp
from jax.experimental import pallas as pl
from jax.experimental.pallas import tpu as pltpu


def _ndn_kernel(x_ref, y_ref,
                wx_ref, wy_ref, bin_ref,
                w1_ref, b1_ref,
                wout_ref, bout_ref,
                o_ref):
    # input_layer on the (virtual) concat [x, y]: bf16 MXU matmuls, f32 accum.
    h = (jnp.dot(x_ref[...], wx_ref[...], preferred_element_type=jnp.float32)
         + jnp.dot(y_ref[...], wy_ref[...], preferred_element_type=jnp.float32)
         + bin_ref[...])

    # ResidualBlockSmallBatchNorm (inference): Linear (BN folded) -> ReLU
    # -> Dropout(identity) -> + residual.
    out = jnp.dot(h.astype(jnp.bfloat16), w1_ref[...],
                  preferred_element_type=jnp.float32) + b1_ref[...]
    out = jnp.maximum(out, 0.0) + h

    # output_layer with out_features == 1: VPU multiply + XLU lane reduction.
    logits = jnp.sum(out * wout_ref[...], axis=-1, keepdims=True) + bout_ref[...]
    o_ref[...] = jax.nn.sigmoid(logits) * 3.0


def neighborhood_distance_forward(x, y, params, *, block_batch=256):
    """x, y: [B, input_size] f32 (cast to bf16 here). params: see prepare_params."""
    B, in_size = x.shape
    H = params["w1"].shape[0]

    # Batch tile: full batch if small, else a sublane-aligned tile.
    TB = B if B <= block_batch else block_batch
    grid = (pl.cdiv(B, TB),)

    xb = x.astype(jnp.bfloat16)
    yb = y.astype(jnp.bfloat16)

    # Rough cost hint for XLA's scheduler.
    flops = 2 * B * (2 * in_size * H + H * H + H)
    bytes_accessed = (
        2 * B * in_size * 2                 # x, y (bf16)
        + (2 * in_size * H + H * H) * 2     # bf16 weights
        + (2 * H + H + 1) * 4               # f32 biases / w_out row
        + B * 4                             # output
    )
    cost = pl.CostEstimate(flops=flops, transcendentals=B,
                           bytes_accessed=bytes_accessed)

    return pl.pallas_call(
        _ndn_kernel,
        out_shape=jax.ShapeDtypeStruct((B, 1), jnp.float32),
        grid_spec=pltpu.PrefetchScalarGridSpec(
            num_scalar_prefetch=0,
            grid=grid,
            in_specs=[
                pl.BlockSpec((TB, in_size), lambda i: (i, 0)),   # x tile
                pl.BlockSpec((TB, in_size), lambda i: (i, 0)),   # y tile
                pl.BlockSpec((in_size, H), lambda i: (0, 0)),    # w_x (resident)
                pl.BlockSpec((in_size, H), lambda i: (0, 0)),    # w_y (resident)
                pl.BlockSpec((1, H), lambda i: (0, 0)),          # b_in
                pl.BlockSpec((H, H), lambda i: (0, 0)),          # w1 (BN folded)
                pl.BlockSpec((1, H), lambda i: (0, 0)),          # b1 (BN folded)
                pl.BlockSpec((1, H), lambda i: (0, 0)),          # w_out row (f32)
                pl.BlockSpec((1, 1), lambda i: (0, 0)),          # b_out
            ],
            out_specs=pl.BlockSpec((TB, 1), lambda i: (i, 0)),
        ),
        compiler_params=pltpu.CompilerParams(
            dimension_semantics=("parallel",),
            vmem_limit_bytes=32 * 1024 * 1024,
        ),
        cost_estimate=cost,
    )(xb, yb,
      params["w_x"], params["w_y"], params["b_in"],
      params["w1"], params["b1"],
      params["w_out"], params["b_out"])


# ----------------------------------------------------------------------------
# Parameter construction / prep (host side)
# ----------------------------------------------------------------------------

def init_raw_params(key, input_size, hidden_size):
    """PyTorch-like raw parameters (math layout: [in_features, out_features])."""
    ks = jax.random.split(key, 10)
    H = hidden_size
    return {
        "w_in": jax.random.normal(ks[0], (2 * input_size, H), jnp.float32) * 0.05,
        "b_in": jax.random.normal(ks[1], (H,), jnp.float32) * 0.05,
        "w1":   jax.random.normal(ks[2], (H, H), jnp.float32) * 0.05,
        "b1":   jax.random.normal(ks[3], (H,), jnp.float32) * 0.05,
        "bn_gamma": 1.0 + 0.1 * jax.random.normal(ks[4], (H,), jnp.float32),
        "bn_beta":  0.1 * jax.random.normal(ks[5], (H,), jnp.float32),
        "bn_mean":  0.05 * jax.random.normal(ks[6], (H,), jnp.float32),
        "bn_var":   1.0 + 0.1 * jax.random.uniform(ks[7], (H,), jnp.float32),
        "w_out": jax.random.normal(ks[8], (H, 1), jnp.float32) * 0.05,
        "b_out": jax.random.normal(ks[9], (1,), jnp.float32) * 0.05,
    }


def prepare_params(raw, eps=1e-5):
    """Split the concat weight, fold BN into the block Linear, cast matmul
    weights to bf16 (biases / the 1-wide output row stay f32)."""
    in2, H = raw["w_in"].shape
    input_size = in2 // 2
    scale = raw["bn_gamma"] / jnp.sqrt(raw["bn_var"] + eps)          # (H,)
    w1_folded = raw["w1"] * scale[None, :]
    b1_folded = (raw["b1"] - raw["bn_mean"]) * scale + raw["bn_beta"]
    return {
        "w_x":   raw["w_in"][:input_size].astype(jnp.bfloat16),
        "w_y":   raw["w_in"][input_size:].astype(jnp.bfloat16),
        "b_in":  raw["b_in"].reshape(1, H),
        "w1":    w1_folded.astype(jnp.bfloat16),
        "b1":    b1_folded.reshape(1, H),
        "w_out": raw["w_out"].reshape(1, H),                         # f32 row
        "b_out": raw["b_out"].reshape(1, 1),
    }


# ----------------------------------------------------------------------------
# References
# ----------------------------------------------------------------------------

def reference_forward_f32(x, y, raw, eps=1e-5):
    """Pure-f32 reference mirroring the PyTorch module in eval mode."""
    h = jnp.concatenate([x, y], axis=1) @ raw["w_in"] + raw["b_in"]
    res = h
    out = h @ raw["w1"] + raw["b1"]
    out = ((out - raw["bn_mean"]) / jnp.sqrt(raw["bn_var"] + eps)
           * raw["bn_gamma"] + raw["bn_beta"])
    out = jnp.maximum(out, 0.0)
    out = out + res
    logits = out @ raw["w_out"] + raw["b_out"]
    return jax.nn.sigmoid(logits) * 3.0


def reference_forward_prepared(x, y, p):
    """Reference with the same folded/bf16 numerics as the kernel."""
    h = (jnp.dot(x.astype(jnp.bfloat16), p["w_x"], preferred_element_type=jnp.float32)
         + jnp.dot(y.astype(jnp.bfloat16), p["w_y"], preferred_element_type=jnp.float32)
         + p["b_in"])
    out = jnp.dot(h.astype(jnp.bfloat16), p["w1"],
                  preferred_element_type=jnp.float32) + p["b1"]
    out = jnp.maximum(out, 0.0) + h
    logits = jnp.sum(out * p["w_out"], axis=-1, keepdims=True) + p["b_out"]
    return jax.nn.sigmoid(logits) * 3.0


if __name__ == "__main__":
    key = jax.random.PRNGKey(0)
    k_x, k_y, k_p = jax.random.split(key, 3)

    # Small, lane/sublane-aligned shapes: 2 grid steps at TB=64.
    batch = 128
    input_size = 128
    hidden_size = 128

    x = jax.random.normal(k_x, (batch, input_size), jnp.float32)
    y = jax.random.normal(k_y, (batch, input_size), jnp.float32)

    raw = init_raw_params(k_p, input_size, hidden_size)
    params = prepare_params(raw)

    out = neighborhood_distance_forward(x, y, params, block_batch=64)
    out = jax.block_until_ready(out)
    assert out.shape == (batch, 1)

    # Tight check vs a reference with identical (folded, bf16-operand) numerics.
    ref_bf16 = reference_forward_prepared(x, y, params)
    assert jnp.allclose(out, ref_bf16, atol=1e-3, rtol=1e-3), "mismatch vs bf16 reference"

    # Loose check vs the pure-f32 PyTorch-equivalent path (bf16 cast tolerance).
    ref_f32 = reference_forward_f32(x, y, raw)
    assert jnp.allclose(out, ref_f32, atol=5e-2, rtol=5e-2), "mismatch vs f32 reference"

    print("KERNEL_OK")
</pallas_src>

<mosaic_0001>
module attributes {stable_mosaic.version = 11 : i64} {
  func.func @_ndn_kernel(%arg0: i32, %arg1: memref<64x128xbf16, #tpu.memory_space<vmem>>, %arg2: memref<64x128xbf16, #tpu.memory_space<vmem>>, %arg3: memref<128x128xbf16, #tpu.memory_space<vmem>>, %arg4: memref<128x128xbf16, #tpu.memory_space<vmem>>, %arg5: memref<1x128xf32, #tpu.memory_space<vmem>>, %arg6: memref<128x128xbf16, #tpu.memory_space<vmem>>, %arg7: memref<1x128xf32, #tpu.memory_space<vmem>>, %arg8: memref<1x128xf32, #tpu.memory_space<vmem>>, %arg9: memref<1x1xf32, #tpu.memory_space<vmem>>, %arg10: memref<64x1xf32, #tpu.memory_space<vmem>>) attributes {dimension_semantics = [#tpu.dimension_semantics<parallel>], iteration_bounds = array<i64: 2>, scalar_prefetch = 0 : i64, scratch_operands = 0 : i64, tpu.core_type = #tpu.core_type<tc>, window_params = [{transform_indices = @transform_0, window_bounds = array<i64: 64, 128>}, {transform_indices = @transform_1, window_bounds = array<i64: 64, 128>}, {pipeline_mode = #tpu.pipeline_mode<synchronous>, transform_indices = @transform_2, window_bounds = array<i64: 128, 128>}, {pipeline_mode = #tpu.pipeline_mode<synchronous>, transform_indices = @transform_3, window_bounds = array<i64: 128, 128>}, {pipeline_mode = #tpu.pipeline_mode<synchronous>, transform_indices = @transform_4, window_bounds = array<i64: 1, 128>}, {pipeline_mode = #tpu.pipeline_mode<synchronous>, transform_indices = @transform_5, window_bounds = array<i64: 128, 128>}, {pipeline_mode = #tpu.pipeline_mode<synchronous>, transform_indices = @transform_6, window_bounds = array<i64: 1, 128>}, {pipeline_mode = #tpu.pipeline_mode<synchronous>, transform_indices = @transform_7, window_bounds = array<i64: 1, 128>}, {pipeline_mode = #tpu.pipeline_mode<synchronous>, transform_indices = @transform_8, window_bounds = array<i64: 1, 1>}, {transform_indices = @transform_9, window_bounds = array<i64: 64, 1>}]} {
    %c0 = arith.constant 0 : index
    %c0_0 = arith.constant 0 : index
    %0 = vector.load %arg1[%c0, %c0_0] : memref<64x128xbf16, #tpu.memory_space<vmem>>, vector<64x128xbf16>
    %c0_1 = arith.constant 0 : index
    %c0_2 = arith.constant 0 : index
    %1 = vector.load %arg3[%c0_1, %c0_2] : memref<128x128xbf16, #tpu.memory_space<vmem>>, vector<128x128xbf16>
    %cst = arith.constant dense<0.000000e+00> : vector<64x128xf32>
    %2 = tpu.matmul %0, %1, %cst {dimension_numbers = #tpu.dot_dimension_numbers<[1], [0], [0], [1], [0, 0, 1, 1], [], []>} : vector<64x128xbf16>, vector<128x128xbf16>, vector<64x128xf32> -> vector<64x128xf32>
    %c0_3 = arith.constant 0 : index
    %c0_4 = arith.constant 0 : index
    %3 = vector.load %arg2[%c0_3, %c0_4] : memref<64x128xbf16, #tpu.memory_space<vmem>>, vector<64x128xbf16>
    %c0_5 = arith.constant 0 : index
    %c0_6 = arith.constant 0 : index
    %4 = vector.load %arg4[%c0_5, %c0_6] : memref<128x128xbf16, #tpu.memory_space<vmem>>, vector<128x128xbf16>
    %cst_7 = arith.constant dense<0.000000e+00> : vector<64x128xf32>
    %5 = tpu.matmul %3, %4, %cst_7 {dimension_numbers = #tpu.dot_dimension_numbers<[1], [0], [0], [1], [0, 0, 1, 1], [], []>} : vector<64x128xbf16>, vector<128x128xbf16>, vector<64x128xf32> -> vector<64x128xf32>
    %6 = arith.addf %2, %5 : vector<64x128xf32>
    %c0_8 = arith.constant 0 : index
    %c0_9 = arith.constant 0 : index
    %7 = vector.load %arg5[%c0_8, %c0_9] : memref<1x128xf32, #tpu.memory_space<vmem>>, vector<1x128xf32>
    %8 = vector.broadcast %7 : vector<1x128xf32> to vector<64x128xf32>
    %9 = arith.addf %6, %8 : vector<64x128xf32>
    %10 = arith.truncf %9 : vector<64x128xf32> to vector<64x128xbf16>
    %c0_10 = arith.constant 0 : index
    %c0_11 = arith.constant 0 : index
    %11 = vector.load %arg6[%c0_10, %c0_11] : memref<128x128xbf16, #tpu.memory_space<vmem>>, vector<128x128xbf16>
    %cst_12 = arith.constant dense<0.000000e+00> : vector<64x128xf32>
    %12 = tpu.matmul %10, %11, %cst_12 {dimension_numbers = #tpu.dot_dimension_numbers<[1], [0], [0], [1], [0, 0, 1, 1], [], []>} : vector<64x128xbf16>, vector<128x128xbf16>, vector<64x128xf32> -> vector<64x128xf32>
    %c0_13 = arith.constant 0 : index
    %c0_14 = arith.constant 0 : index
    %13 = vector.load %arg7[%c0_13, %c0_14] : memref<1x128xf32, #tpu.memory_space<vmem>>, vector<1x128xf32>
    %14 = vector.broadcast %13 : vector<1x128xf32> to vector<64x128xf32>
    %15 = arith.addf %12, %14 : vector<64x128xf32>
    %cst_15 = arith.constant 0.000000e+00 : f32
    %16 = vector.broadcast %cst_15 : f32 to vector<64x128xf32>
    %17 = arith.maximumf %15, %16 : vector<64x128xf32>
    %18 = arith.addf %17, %9 : vector<64x128xf32>
    %c0_16 = arith.constant 0 : index
    %c0_17 = arith.constant 0 : index
    %19 = vector.load %arg8[%c0_16, %c0_17] : memref<1x128xf32, #tpu.memory_space<vmem>>, vector<1x128xf32>
    %20 = vector.broadcast %19 : vector<1x128xf32> to vector<64x128xf32>
    %21 = arith.mulf %18, %20 : vector<64x128xf32>
    %cst_18 = arith.constant dense<0.000000e+00> : vector<64xf32>
    %22 = vector.multi_reduction <add>, %21, %cst_18 [1] : vector<64x128xf32> to vector<64xf32>
    %23 = vector.shape_cast %22 : vector<64xf32> to vector<64x1xf32>
    %c0_19 = arith.constant 0 : index
    %c0_20 = arith.constant 0 : index
    %24 = vector.load %arg9[%c0_19, %c0_20] : memref<1x1xf32, #tpu.memory_space<vmem>>, vector<1x1xf32>
    %25 = vector.broadcast %24 : vector<1x1xf32> to vector<64x1xf32>
    %26 = arith.addf %23, %25 : vector<64x1xf32>
    %27 = arith.negf %26 : vector<64x1xf32>
    %28 = math.exp %27 : vector<64x1xf32>
    %cst_21 = arith.constant 1.000000e+00 : f32
    %29 = vector.broadcast %cst_21 : f32 to vector<64x1xf32>
    %30 = arith.addf %29, %28 : vector<64x1xf32>
    %31 = arith.divf %29, %30 : vector<64x1xf32>
    %cst_22 = arith.constant 3.000000e+00 : f32
    %32 = vector.broadcast %cst_22 : f32 to vector<64x1xf32>
    %33 = arith.mulf %31, %32 : vector<64x1xf32>
    %c0_23 = arith.constant 0 : index
    %c0_24 = arith.constant 0 : index
    %34 = vector.load %arg10[%c0_23, %c0_24] : memref<64x1xf32, #tpu.memory_space<vmem>>, vector<64x1xf32>
    tpu.vector_store %arg10[%c0_23, %c0_24], %33 {strides = array<i32>} : memref<64x1xf32, #tpu.memory_space<vmem>>, vector<64x1xf32>,
    return
  }
  func.func @transform_0(%arg0: i32) -> (i32, i32) {
    %c0_i32 = arith.constant 0 : i32
    %c0_i32_0 = arith.constant 0 : i32
    return %arg0, %c0_i32 : i32, i32
  }
  func.func @transform_1(%arg0: i32) -> (i32, i32) {
    %c0_i32 = arith.constant 0 : i32
    %c0_i32_0 = arith.constant 0 : i32
    return %arg0, %c0_i32 : i32, i32
  }
  func.func @transform_2(%arg0: i32) -> (i32, i32) {
    %c0_i32 = arith.constant 0 : i32
    %c0_i32_0 = arith.constant 0 : i32
    %c0_i32_1 = arith.constant 0 : i32
    return %c0_i32, %c0_i32_0 : i32, i32
  }
  func.func @transform_3(%arg0: i32) -> (i32, i32) {
    %c0_i32 = arith.constant 0 : i32
    %c0_i32_0 = arith.constant 0 : i32
    %c0_i32_1 = arith.constant 0 : i32
    return %c0_i32, %c0_i32_0 : i32, i32
  }
  func.func @transform_4(%arg0: i32) -> (i32, i32) {
    %c0_i32 = arith.constant 0 : i32
    %c0_i32_0 = arith.constant 0 : i32
    %c0_i32_1 = arith.constant 0 : i32
    return %c0_i32, %c0_i32_0 : i32, i32
  }
  func.func @transform_5(%arg0: i32) -> (i32, i32) {
    %c0_i32 = arith.constant 0 : i32
    %c0_i32_0 = arith.constant 0 : i32
    %c0_i32_1 = arith.constant 0 : i32
    return %c0_i32, %c0_i32_0 : i32, i32
  }
  func.func @transform_6(%arg0: i32) -> (i32, i32) {
    %c0_i32 = arith.constant 0 : i32
    %c0_i32_0 = arith.constant 0 : i32
    %c0_i32_1 = arith.constant 0 : i32
    return %c0_i32, %c0_i32_0 : i32, i32
  }
  func.func @transform_7(%arg0: i32) -> (i32, i32) {
    %c0_i32 = arith.constant 0 : i32
    %c0_i32_0 = arith.constant 0 : i32
    %c0_i32_1 = arith.constant 0 : i32
    return %c0_i32, %c0_i32_0 : i32, i32
  }
  func.func @transform_8(%arg0: i32) -> (i32, i32) {
    %c0_i32 = arith.constant 0 : i32
    %c0_i32_0 = arith.constant 0 : i32
    %c0_i32_1 = arith.constant 0 : i32
    return %c0_i32, %c0_i32_0 : i32, i32
  }
  func.func @transform_9(%arg0: i32) -> (i32, i32) {
    %c0_i32 = arith.constant 0 : i32
    %c0_i32_0 = arith.constant 0 : i32
    return %arg0, %c0_i32 : i32, i32
  }
}

</mosaic_0001>

<llo_original>
// kernel: tpu_custom_call.1
$region0: #{tpu_custom_call.1}
  #allocation0 [shape = 'u32[]', space=smem, size = 0x4, offset = 0x4, fixed_abs, tag = 'smem constant byte address 0x4 - core index']
  #allocation1 [shape = 'u32[144,128]{1,0:T(1,128)}', space=vmem, size = 0x12000, scoped, tag = 'internal scratch']
  #allocation2 [shape = 'f32[1,1]{1,0:T(1,128)S(1)}', space=vmem, size = 0x200, scoped, tag = 'scoped memory for tpu_custom_call.1']
  %s0 = inlined_call_operand.hbm [shape: bf16[128,128], index: 0, kind: input, shape index: {}]
  %s1 = inlined_call_operand.hbm [shape: bf16[128,128], index: 1, kind: input, shape index: {}]
  %s2 = inlined_call_operand.hbm [shape: bf16[128,128], index: 2, kind: input, shape index: {}]
  %s3 = inlined_call_operand.hbm [shape: bf16[128,128], index: 3, kind: input, shape index: {}]
  %s4 = inlined_call_operand.vmem [shape: f32[1,128], index: 4, kind: input, shape index: {}]
  %s5 = inlined_call_operand.hbm [shape: bf16[128,128], index: 5, kind: input, shape index: {}]
  %s6 = inlined_call_operand.vmem [shape: f32[1,128], index: 6, kind: input, shape index: {}]
  %s7 = inlined_call_operand.vmem [shape: f32[1,128], index: 7, kind: input, shape index: {}]
  %s8 = inlined_call_operand.<no memory space> [shape: f32[1,1], index: 8, kind: input, shape index: {}]
  %s9 = inlined_call_operand.vmem [shape: f32[128,1], index: 9, kind: output, shape index: {}]
  %s10 = sld [smem:[#allocation0]]
  $region89: #{tpu_custom_call.1} parent=0
    _
  %s12 = ssub.s32 1, %s10
  %s13 = scalar_select 0, %s12, %s10
  %v14 = vstv %s8
  %15 = vst [vmem:[#allocation2] sm:$0x1] %v14
  $region1: #{tpu_custom_call.1} parent=0
    #allocation3 [shape = 'u8[32768]{0}', space=vmem, size = 0x8000, scoped, tag = 'input window, operand 0']
    #allocation4 [shape = 's32[2]{0}', space=sflag, size = 0x8, scoped, tag = 'scoped memory for tpu_custom_call.1']
    #allocation5 [shape = 'u8[32768]{0}', space=vmem, size = 0x8000, scoped, tag = 'input window, operand 1']
    #allocation6 [shape = 's32[2]{0}', space=sflag, size = 0x8, scoped, tag = 'scoped memory for tpu_custom_call.1']
    #allocation7 [shape = 'u8[32768]{0}', space=vmem, size = 0x8000, scoped, tag = 'input window, operand 2, single buffered']
    #allocation8 [shape = 'u8[32768]{0}', space=vmem, size = 0x8000, scoped, tag = 'input window, operand 3, single buffered']
    #allocation9 [shape = 's32[1]{0}', space=sflag, size = 0x4, scoped, tag = 'scoped memory for tpu_custom_call.1']
    #allocation10 [shape = 'u8[32768]{0}', space=vmem, size = 0x8000, scoped, tag = 'input window, operand 5, single buffered']
    %16 = vsyncpa [#allocation4], 0
    %s17 = scalar_lea.sflag [#allocation4], 1
    %18 = vsyncpa %s17, 0
    %19 = vsyncpa [#allocation6], 0
    %s20 = scalar_lea.sflag [#allocation6], 1
    %21 = vsyncpa %s20, 0
    %22 = vsyncpa [#allocation9], 0
    loop: start=0, step=1, limit=4
    $region2: #{tpu_custom_call.1} parent=1 // loop_pre_header
      _
    $region3: #{tpu_custom_call.1} parent=1 // loop_header
      %s24 = sphi 0, %s28
      %p25 = scmp.ge.s32.totalorder %s24, 4
      %s34 = sphi 0, %s36
      %s37 = sphi 0, %s34
      %s38 = sphi 0, %s37
      %s54 = sphi 0, %s38
      %s60 = sphi 0, %s62
      %s63 = sphi 0, %s60
      %s64 = sphi 0, %s63
      %s80 = sphi 0, %s64
      %s84 = sphi 0, %s84
      %s86 = sphi 0, %s84
      %s87 = sphi 0, %s86
      %s101 = sphi 0, %s87
      %s105 = sphi 0, %s105
      %s107 = sphi 0, %s105
      %s108 = sphi 0, %s107
      %s122 = sphi 0, %s108
      %s126 = sphi 0, %s126
      %s128 = sphi 0, %s126
      %s129 = sphi 0, %s128
      %s143 = sphi 0, %s129
      %s147 = sphi 0, %s147
      %s149 = sphi 0, %s147
      %s150 = sphi 0, %s149
      %s164 = sphi 0, %s150
      %s168 = sphi 0, %s168
      %s170 = sphi 0, %s168
      %s171 = sphi 0, %s170
      %s185 = sphi 0, %s171
      %s189 = sphi 0, %s189
      %s191 = sphi 0, %s189
      %s192 = sphi 0, %s191
      %s206 = sphi 0, %s192
      %s210 = sphi 0, %s210
      %s212 = sphi 0, %s210
      %s213 = sphi 0, %s212
      %s227 = sphi 0, %s213
      %s233 = sphi 0, %s235
      %s236 = sphi 0, %s233
      %s237 = sphi 0, %s236
      %s253 = sphi 0, %s237
    $region4: #{tpu_custom_call.1} parent=1 // loop_header_branch
      %27 = sbr.rel (%p25) target = $region8
    $region5: #{tpu_custom_call.1} parent=1 // loop_body
      %s29 = ssub.s32 %s24, 1
      %s30 = ssub.s32 %s24, 2
      %s31 = sadd.s32 %s24, 1
      %s32 = ssub.s32 %s24, %s31
      %p33 = scmp.eq.s32.totalorder %s32, 0
      %s35 = sadd.s32 %s34, 1
      %s36 = scalar_select %p33, %s34, %s35
      %p39 = pneg %p33
      %p40 = scmp.eq.s32.totalorder %s24, 1
      %p41 = por %p39, %p40
      %p42 = scmp.ne.s32.totalorder %s34, %s37
      %p43 = scmp.eq.s32.totalorder %s24, 0
      %p44 = por %p42, %p43
      %p45 = scmp.ne.s32.totalorder %s34, %s37
      %p46 = scmp.eq.s32.totalorder %s29, 1
      %p47 = por %p45, %p46
      %p48 = scmp.ne.s32.totalorder %s37, %s38
      %p49 = scmp.eq.s32.totalorder %s29, 0
      %p50 = por %p48, %p49
      %p51 = scmp.ne.s32.totalorder %s37, %s38
      %p52 = scmp.eq.s32.totalorder %s30, 1
      %p53 = por %p51, %p52
      %p55 = scmp.ne.s32.totalorder %s38, %s54
      %p56 = scmp.eq.s32.totalorder %s30, 0
      %p57 = por %p55, %p56
      %s58 = ssub.s32 %s24, %s31
      %p59 = scmp.eq.s32.totalorder %s58, 0
      %s61 = sadd.s32 %s60, 1
      %s62 = scalar_select %p59, %s60, %s61
      %p65 = pneg %p59
      %p66 = scmp.eq.s32.totalorder %s24, 1
      %p67 = por %p65, %p66
      %p68 = scmp.ne.s32.totalorder %s60, %s63
      %p69 = scmp.eq.s32.totalorder %s24, 0
      %p70 = por %p68, %p69
      %p71 = scmp.ne.s32.totalorder %s60, %s63
      %p72 = scmp.eq.s32.totalorder %s29, 1
      %p73 = por %p71, %p72
      %p74 = scmp.ne.s32.totalorder %s63, %s64
      %p75 = scmp.eq.s32.totalorder %s29, 0
      %p76 = por %p74, %p75
      %p77 = scmp.ne.s32.totalorder %s63, %s64
      %p78 = scmp.eq.s32.totalorder %s30, 1
      %p79 = por %p77, %p78
      %p81 = scmp.ne.s32.totalorder %s64, %s80
      %p82 = scmp.eq.s32.totalorder %s30, 0
      %p83 = por %p81, %p82
      %s85 = sadd.s32 %s84, 1
      %p88 = scmp.eq.s32.totalorder %s24, 1
      %p89 = scmp.ne.s32.totalorder %s84, %s86
      %p90 = scmp.eq.s32.totalorder %s24, 0
      %p91 = por %p89, %p90
      %p92 = scmp.ne.s32.totalorder %s84, %s86
      %p93 = scmp.eq.s32.totalorder %s29, 1
      %p94 = por %p92, %p93
      %p95 = scmp.ne.s32.totalorder %s86, %s87
      %p96 = scmp.eq.s32.totalorder %s29, 0
      %p97 = por %p95, %p96
      %p98 = scmp.ne.s32.totalorder %s86, %s87
      %p99 = scmp.eq.s32.totalorder %s30, 1
      %p100 = por %p98, %p99
      %p102 = scmp.ne.s32.totalorder %s87, %s101
      %p103 = scmp.eq.s32.totalorder %s30, 0
      %p104 = por %p102, %p103
      %s106 = sadd.s32 %s105, 1
      %p109 = scmp.eq.s32.totalorder %s24, 1
      %p110 = scmp.ne.s32.totalorder %s105, %s107
      %p111 = scmp.eq.s32.totalorder %s24, 0
      %p112 = por %p110, %p111
      %p113 = scmp.ne.s32.totalorder %s105, %s107
      %p114 = scmp.eq.s32.totalorder %s29, 1
      %p115 = por %p113, %p114
      %p116 = scmp.ne.s32.totalorder %s107, %s108
      %p117 = scmp.eq.s32.totalorder %s29, 0
      %p118 = por %p116, %p117
      %p119 = scmp.ne.s32.totalorder %s107, %s108
      %p120 = scmp.eq.s32.totalorder %s30, 1
      %p121 = por %p119, %p120
      %p123 = scmp.ne.s32.totalorder %s108, %s122
      %p124 = scmp.eq.s32.totalorder %s30, 0
      %p125 = por %p123, %p124
      %s127 = sadd.s32 %s126, 1
      %p130 = scmp.eq.s32.totalorder %s24, 1
      %p131 = scmp.ne.s32.totalorder %s126, %s128
      %p132 = scmp.eq.s32.totalorder %s24, 0
      %p133 = por %p131, %p132
      %p134 = scmp.ne.s32.totalorder %s126, %s128
      %p135 = scmp.eq.s32.totalorder %s29, 1
      %p136 = por %p134, %p135
      %p137 = scmp.ne.s32.totalorder %s128, %s129
      %p138 = scmp.eq.s32.totalorder %s29, 0
      %p139 = por %p137, %p138
      %p140 = scmp.ne.s32.totalorder %s128, %s129
      %p141 = scmp.eq.s32.totalorder %s30, 1
      %p142 = por %p140, %p141
      %p144 = scmp.ne.s32.totalorder %s129, %s143
      %p145 = scmp.eq.s32.totalorder %s30, 0
      %p146 = por %p144, %p145
      %s148 = sadd.s32 %s147, 1
      %p151 = scmp.eq.s32.totalorder %s24, 1
      %p152 = scmp.ne.s32.totalorder %s147, %s149
      %p153 = scmp.eq.s32.totalorder %s24, 0
      %p154 = por %p152, %p153
      %p155 = scmp.ne.s32.totalorder %s147, %s149
      %p156 = scmp.eq.s32.totalorder %s29, 1
      %p157 = por %p155, %p156
      %p158 = scmp.ne.s32.totalorder %s149, %s150
      %p159 = scmp.eq.s32.totalorder %s29, 0
      %p160 = por %p158, %p159
      %p161 = scmp.ne.s32.totalorder %s149, %s150
      %p162 = scmp.eq.s32.totalorder %s30, 1
      %p163 = por %p161, %p162
      %p165 = scmp.ne.s32.totalorder %s150, %s164
      %p166 = scmp.eq.s32.totalorder %s30, 0
      %p167 = por %p165, %p166
      %s169 = sadd.s32 %s168, 1
      %p172 = scmp.eq.s32.totalorder %s24, 1
      %p173 = scmp.ne.s32.totalorder %s168, %s170
      %p174 = scmp.eq.s32.totalorder %s24, 0
      %p175 = por %p173, %p174
      %p176 = scmp.ne.s32.totalorder %s168, %s170
      %p177 = scmp.eq.s32.totalorder %s29, 1
      %p178 = por %p176, %p177
      %p179 = scmp.ne.s32.totalorder %s170, %s171
      %p180 = scmp.eq.s32.totalorder %s29, 0
      %p181 = por %p179, %p180
      %p182 = scmp.ne.s32.totalorder %s170, %s171
      %p183 = scmp.eq.s32.totalorder %s30, 1
      %p184 = por %p182, %p183
      %p186 = scmp.ne.s32.totalorder %s171, %s185
      %p187 = scmp.eq.s32.totalorder %s30, 0
      %p188 = por %p186, %p187
      %s190 = sadd.s32 %s189, 1
      %p193 = scmp.eq.s32.totalorder %s24, 1
      %p194 = scmp.ne.s32.totalorder %s189, %s191
      %p195 = scmp.eq.s32.totalorder %s24, 0
      %p196 = por %p194, %p195
      %p197 = scmp.ne.s32.totalorder %s189, %s191
      %p198 = scmp.eq.s32.totalorder %s29, 1
      %p199 = por %p197, %p198
      %p200 = scmp.ne.s32.totalorder %s191, %s192
      %p201 = scmp.eq.s32.totalorder %s29, 0
      %p202 = por %p200, %p201
      %p203 = scmp.ne.s32.totalorder %s191, %s192
      %p204 = scmp.eq.s32.totalorder %s30, 1
      %p205 = por %p203, %p204
      %p207 = scmp.ne.s32.totalorder %s192, %s206
      %p208 = scmp.eq.s32.totalorder %s30, 0
      %p209 = por %p207, %p208
      %s211 = sadd.s32 %s210, 1
      %p214 = scmp.eq.s32.totalorder %s24, 1
      %p215 = scmp.ne.s32.totalorder %s210, %s212
      %p216 = scmp.eq.s32.totalorder %s24, 0
      %p217 = por %p215, %p216
      %p218 = scmp.ne.s32.totalorder %s210, %s212
      %p219 = scmp.eq.s32.totalorder %s29, 1
      %p220 = por %p218, %p219
      %p221 = scmp.ne.s32.totalorder %s212, %s213
      %p222 = scmp.eq.s32.totalorder %s29, 0
      %p223 = por %p221, %p222
      %p224 = scmp.ne.s32.totalorder %s212, %s213
      %p225 = scmp.eq.s32.totalorder %s30, 1
      %p226 = por %p224, %p225
      %p228 = scmp.ne.s32.totalorder %s213, %s227
      %p229 = scmp.eq.s32.totalorder %s30, 0
      %p230 = por %p228, %p229
      %s231 = ssub.s32 %s24, %s31
      %p232 = scmp.eq.s32.totalorder %s231, 0
      %s234 = sadd.s32 %s233, 1
      %s235 = scalar_select %p232, %s233, %s234
      %p238 = pneg %p232
      %p239 = scmp.eq.s32.totalorder %s24, 1
      %p240 = por %p238, %p239
      %p241 = scmp.ne.s32.totalorder %s233, %s236
      %p242 = scmp.eq.s32.totalorder %s24, 0
      %p243 = por %p241, %p242
      %p244 = scmp.ne.s32.totalorder %s233, %s236
      %p245 = scmp.eq.s32.totalorder %s29, 1
      %p246 = por %p244, %p245
      %p247 = scmp.ne.s32.totalorder %s236, %s237
      %p248 = scmp.eq.s32.totalorder %s29, 0
      %p249 = por %p247, %p248
      %p250 = scmp.ne.s32.totalorder %s236, %s237
      %p251 = scmp.eq.s32.totalorder %s30, 1
      %p252 = por %p250, %p251
      %p254 = scmp.ne.s32.totalorder %s237, %s253
      %p255 = scmp.eq.s32.totalorder %s30, 0
      %p256 = por %p254, %p255
      %p257 = scmp.le.s32.totalorder 1, %s24
      %p258 = scmp.lt.s32.totalorder %s24, 3
      %p259 = pnand %p257, %p258
      %p260 = pneg %p259
      // Predicated region
      $region9: #{tpu_custom_call.1} parent=5 // pred_check
        _
      $region10: #{tpu_custom_call.1} parent=5 // pred_check_branch
        %262 = sbr.rel (%p259) target = $region12
      $region11: #{tpu_custom_call.1} parent=5 // pred_region
        %s263 = ssub.s32 %s24, 1
        // Predicated region
        $region13: #{tpu_custom_call.1} parent=11 // pred_check
          %p264 = pneg %p97
        $region14: #{tpu_custom_call.1} parent=11 // pred_check_branch
          %266 = sbr.rel (%p264) target = $region16
        $region15: #{tpu_custom_call.1} parent=11 // pred_region
          %s268 = ssub.s32 1024, 1024
          %269 = vsyncadd [#allocation6], %s268
          %s270 = sshll.u32 [#allocation7], 4
          %s271 = int_to_ptr.vmem [resolvable:$true] %s270
          %276 = dma.hbm_to_vmem [thread:$0]  %s2, 1024, %s271, [#allocation6], 64, 64, 4
        $region16: #{tpu_custom_call.1} parent=11 // pred_fallthru
          _
        // Predicated region
        $region17: #{tpu_custom_call.1} parent=11 // pred_check
          %p277 = pneg %p118
        $region18: #{tpu_custom_call.1} parent=11 // pred_check_branch
          %279 = sbr.rel (%p277) target = $region20
        $region19: #{tpu_custom_call.1} parent=11 // pred_region
          %s281 = ssub.s32 1024, 1024
          %282 = vsyncadd [#allocation9], %s281
          %s283 = sshll.u32 [#allocation8], 4
          %s284 = int_to_ptr.vmem [resolvable:$true] %s283
          %289 = dma.hbm_to_vmem [thread:$0]  %s3, 1024, %s284, [#allocation9], 64, 64, 4
        $region20: #{tpu_custom_call.1} parent=11 // pred_fallthru
          _
        // Predicated region
        $region21: #{tpu_custom_call.1} parent=11 // pred_check
          %p290 = pneg %p139
        $region22: #{tpu_custom_call.1} parent=11 // pred_check_branch
          %292 = sbr.rel (%p290) target = $region24
        $region23: #{tpu_custom_call.1} parent=11 // pred_region
          _
        $region24: #{tpu_custom_call.1} parent=11 // pred_fallthru
          _
        // Predicated region
        $region25: #{tpu_custom_call.1} parent=11 // pred_check
          %p293 = pneg %p160
        $region26: #{tpu_custom_call.1} parent=11 // pred_check_branch
          %295 = sbr.rel (%p293) target = $region28
        $region27: #{tpu_custom_call.1} parent=11 // pred_region
          %s297 = ssub.s32 1024, 1024
          %298 = vsyncadd [#allocation9], %s297
          %s299 = sshll.u32 [#allocation10], 4
          %s300 = int_to_ptr.vmem [resolvable:$true] %s299
          %305 = dma.hbm_to_vmem [thread:$0]  %s5, 1024, %s300, [#allocation9], 64, 64, 4
        $region28: #{tpu_custom_call.1} parent=11 // pred_fallthru
          _
        // Predicated region
        $region29: #{tpu_custom_call.1} parent=11 // pred_check
          %p306 = pneg %p181
        $region30: #{tpu_custom_call.1} parent=11 // pred_check_branch
          %308 = sbr.rel (%p306) target = $region32
        $region31: #{tpu_custom_call.1} parent=11 // pred_region
          _
        $region32: #{tpu_custom_call.1} parent=11 // pred_fallthru
          _
        // Predicated region
        $region33: #{tpu_custom_call.1} parent=11 // pred_check
          %p309 = pneg %p202
        $region34: #{tpu_custom_call.1} parent=11 // pred_check_branch
          %311 = sbr.rel (%p309) target = $region36
        $region35: #{tpu_custom_call.1} parent=11 // pred_region
          _
        $region36: #{tpu_custom_call.1} parent=11 // pred_fallthru
          _
        // Predicated region
        $region37: #{tpu_custom_call.1} parent=11 // pred_check
          %p312 = pneg %p223
        $region38: #{tpu_custom_call.1} parent=11 // pred_check_branch
          %314 = sbr.rel (%p312) target = $region40
        $region39: #{tpu_custom_call.1} parent=11 // pred_region
          _
        $region40: #{tpu_custom_call.1} parent=11 // pred_fallthru
          _
      $region12: #{tpu_custom_call.1} parent=5 // pred_fallthru
        _
      %p315 = scmp.lt.s32.totalorder %s24, 2
      // Predicated region
      $region41: #{tpu_custom_call.1} parent=5 // pred_check
        %p316 = pneg %p315
      $region42: #{tpu_custom_call.1} parent=5 // pred_check_branch
        %318 = sbr.rel (%p316) target = $region44
      $region43: #{tpu_custom_call.1} parent=5 // pred_region
        // Predicated region
        $region45: #{tpu_custom_call.1} parent=43 // pred_check
          %p319 = pneg %p44
        $region46: #{tpu_custom_call.1} parent=43 // pred_check_branch
          %321 = sbr.rel (%p319) target = $region48
        $region47: #{tpu_custom_call.1} parent=43 // pred_region
          %s322 = sand.u32 %s34, 1
          %s323 = scalar_lea.sflag [#allocation4], %s322
          %s324 = sand.u32 %s34, 1
          %s325 = smul.addr %s324, 32
          %s326 = scalar_lea.vmem [#allocation3], %s325
          %s327 = smul.u32 8, %s24
          %s329 = ssub.s32 512, 512
          %330 = vsyncadd %s323, %s329
          %s331 = smul.addr %s327, 64
          %s332 = scalar_lea.hbm %s0, %s331
          %s333 = sshll.u32 %s326, 4
          %s334 = int_to_ptr.vmem [resolvable:$true] %s333
          %339 = dma.hbm_to_vmem [thread:$0]  %s332, 512, %s334, %s323, 64, 64, 4
        $region48: #{tpu_custom_call.1} parent=43 // pred_fallthru
          _
        // Predicated region
        $region49: #{tpu_custom_call.1} parent=43 // pred_check
          %p340 = pneg %p70
        $region50: #{tpu_custom_call.1} parent=43 // pred_check_branch
          %342 = sbr.rel (%p340) target = $region52
        $region51: #{tpu_custom_call.1} parent=43 // pred_region
          %s343 = sand.u32 %s24, 1
          %s344 = scalar_lea.sflag [#allocation6], %s343
          %s345 = sand.u32 %s60, 1
          %s346 = smul.addr %s345, 32
          %s347 = scalar_lea.vmem [#allocation5], %s346
          %s348 = smul.u32 8, %s24
          %s350 = ssub.s32 512, 512
          %351 = vsyncadd %s344, %s350
          %s352 = smul.addr %s348, 64
          %s353 = scalar_lea.hbm %s1, %s352
          %s354 = sshll.u32 %s347, 4
          %s355 = int_to_ptr.vmem [resolvable:$true] %s354
          %360 = dma.hbm_to_vmem [thread:$0]  %s353, 512, %s355, %s344, 64, 64, 4
        $region52: #{tpu_custom_call.1} parent=43 // pred_fallthru
          _
      $region44: #{tpu_custom_call.1} parent=5 // pred_fallthru
        _
      %p361 = scmp.le.s32.totalorder 1, %s24
      %p362 = scmp.lt.s32.totalorder %s24, 3
      %p363 = pnand %p361, %p362
      %p364 = pneg %p363
      // Predicated region
      $region53: #{tpu_custom_call.1} parent=5 // pred_check
        _
      $region54: #{tpu_custom_call.1} parent=5 // pred_check_branch
        %366 = sbr.rel (%p363) target = $region56
      $region55: #{tpu_custom_call.1} parent=5 // pred_region
        %s367 = ssub.s32 %s24, 1
        %s368 = sand.u32 %s37, 1
        %s369 = scalar_lea.sflag [#allocation4], %s368
        %s370 = sand.u32 %s37, 1
        %s371 = smul.addr %s370, 32
        %s372 = scalar_lea.vmem [#allocation3], %s371
        // Predicated region
        $region57: #{tpu_custom_call.1} parent=55 // pred_check
          %p373 = pneg %p50
        $region58: #{tpu_custom_call.1} parent=55 // pred_check_branch
          %375 = sbr.rel (%p373) target = $region60
        $region59: #{tpu_custom_call.1} parent=55 // pred_region
          %376 = dma.done %s369, 512
        $region60: #{tpu_custom_call.1} parent=55 // pred_fallthru
          _
        %s377 = sand.u32 %s29, 1
        %s378 = scalar_lea.sflag [#allocation6], %s377
        %s379 = sand.u32 %s63, 1
        %s380 = smul.addr %s379, 32
        %s381 = scalar_lea.vmem [#allocation5], %s380
        // Predicated region
        $region61: #{tpu_custom_call.1} parent=55 // pred_check
          %p382 = pneg %p76
        $region62: #{tpu_custom_call.1} parent=55 // pred_check_branch
          %384 = sbr.rel (%p382) target = $region64
        $region63: #{tpu_custom_call.1} parent=55 // pred_region
          %385 = dma.done %s378, 512
        $region64: #{tpu_custom_call.1} parent=55 // pred_fallthru
          _
        // Predicated region
        $region65: #{tpu_custom_call.1} parent=55 // pred_check
          %p386 = pneg %p97
        $region66: #{tpu_custom_call.1} parent=55 // pred_check_branch
          %388 = sbr.rel (%p386) target = $region68
        $region67: #{tpu_custom_call.1} parent=55 // pred_region
          %389 = dma.done [#allocation6], 1024
        $region68: #{tpu_custom_call.1} parent=55 // pred_fallthru
          _
        // Predicated region
        $region69: #{tpu_custom_call.1} parent=55 // pred_check
          %p390 = pneg %p118
        $region70: #{tpu_custom_call.1} parent=55 // pred_check_branch
          %392 = sbr.rel (%p390) target = $region72
        $region71: #{tpu_custom_call.1} parent=55 // pred_region
          %393 = dma.done [#allocation9], 1024
        $region72: #{tpu_custom_call.1} parent=55 // pred_fallthru
          _
        // Predicated region
        $region73: #{tpu_custom_call.1} parent=55 // pred_check
          %p394 = pneg %p160
        $region74: #{tpu_custom_call.1} parent=55 // pred_check_branch
          %396 = sbr.rel (%p394) target = $region76
        $region75: #{tpu_custom_call.1} parent=55 // pred_region
          %397 = dma.done [#allocation9], 1024
        $region76: #{tpu_custom_call.1} parent=55 // pred_fallthru
          _
        %s398 = sand.u32 %s37, 1
        %s399 = scalar_lea.sflag [#allocation4], %s398
        %s400 = sand.u32 %s37, 1
        %s401 = smul.addr %s400, 32
        %s402 = scalar_lea.vmem [#allocation3], %s401
        %p403 = pneg %p50
        %p404 = pneg %p47
        %s405 = sand.u32 %s29, 1
        %s406 = scalar_lea.sflag [#allocation6], %s405
        %s407 = sand.u32 %s63, 1
        %s408 = smul.addr %s407, 32
        %s409 = scalar_lea.vmem [#allocation5], %s408
        %p410 = pneg %p76
        %p411 = pneg %p73
        %p412 = pneg %p97
        %p413 = pneg %p94
        %p414 = pneg %p118
        %p415 = pneg %p115
        %p416 = pneg %p139
        %p417 = pneg %p136
        %p418 = pneg %p160
        %p419 = pneg %p157
        %p420 = pneg %p181
        %p421 = pneg %p178
        %p422 = pneg %p202
        %p423 = pneg %p199
        %p424 = pneg %p223
        %p425 = pneg %p220
        %p426 = pneg %p249
        %p427 = pneg %p246
        %s428 = smul.u32 8, %s29
        %p429 = scmp.lt.s32.totalorder %s428, 15
        %s430 = scalar_select %p429, %s428, 15
        %s431 = smul.addr %s430, 8
        %s432 = scalar_lea.vmem %s9, %s431
        %s433 = smul.u32 8, %s29
        %s434 = smul.u32 8, %s29
        %s435 = smul.u32 8, %s29
        %p436 = scmp.lt.s32.totalorder %s435, 15
        %s437 = scalar_select %p436, %s435, 15
        %s438 = smul.addr %s437, 8
        %s439 = scalar_lea.vmem %s9, %s438
        %s440 = smul.u32 8, %s29
        %v442 = vld [vmem:[%s372] sm:$0xf]
        %v443 = vld [vmem:[%s372 + $0x4] sm:$0xf]
        %v444 = vld [vmem:[%s372 + $0x8] sm:$0xf]
        %v445 = vld [vmem:[%s372 + $0xc] sm:$0xf]
        %v446 = vld [vmem:[%s372 + $0x10] sm:$0xf]
        %v447 = vld [vmem:[%s372 + $0x14] sm:$0xf]
        %v448 = vld [vmem:[%s372 + $0x18] sm:$0xf]
        %v449 = vld [vmem:[%s372 + $0x1c] sm:$0xf]
        %v450 = vld [vmem:[#allocation7] sm:$0xf]
        %v451 = vld [vmem:[#allocation7 + $0x4] sm:$0xf]
        %v452 = vld [vmem:[#allocation7 + $0x8] sm:$0xf]
        %v453 = vld [vmem:[#allocation7 + $0xc] sm:$0xf]
        %v454 = vld [vmem:[#allocation7 + $0x10] sm:$0xf]
        %v455 = vld [vmem:[#allocation7 + $0x14] sm:$0xf]
        %v456 = vld [vmem:[#allocation7 + $0x18] sm:$0xf]
        %v457 = vld [vmem:[#allocation7 + $0x1c] sm:$0xf]
        %v458 = vld [vmem:[#allocation7 + $0x20] sm:$0xf]
        %v459 = vld [vmem:[#allocation7 + $0x24] sm:$0xf]
        %v460 = vld [vmem:[#allocation7 + $0x28] sm:$0xf]
        %v461 = vld [vmem:[#allocation7 + $0x2c] sm:$0xf]
        %v462 = vld [vmem:[#allocation7 + $0x30] sm:$0xf]
        %v463 = vld [vmem:[#allocation7 + $0x34] sm:$0xf]
        %v464 = vld [vmem:[#allocation7 + $0x38] sm:$0xf]
        %v465 = vld [vmem:[#allocation7 + $0x3c] sm:$0xf]
        %v466 = vld [vmem:[%s381] sm:$0xf]
        %v467 = vld [vmem:[%s381 + $0x4] sm:$0xf]
        %v468 = vld [vmem:[%s381 + $0x8] sm:$0xf]
        %v469 = vld [vmem:[%s381 + $0xc] sm:$0xf]
        %v470 = vld [vmem:[%s381 + $0x10] sm:$0xf]
        %v471 = vld [vmem:[%s381 + $0x14] sm:$0xf]
        %v472 = vld [vmem:[%s381 + $0x18] sm:$0xf]
        %v473 = vld [vmem:[%s381 + $0x1c] sm:$0xf]
        %v474 = vld [vmem:[#allocation8] sm:$0xf]
        %v475 = vld [vmem:[#allocation8 + $0x4] sm:$0xf]
        %v476 = vld [vmem:[#allocation8 + $0x8] sm:$0xf]
        %v477 = vld [vmem:[#allocation8 + $0xc] sm:$0xf]
        %v478 = vld [vmem:[#allocation8 + $0x10] sm:$0xf]
        %v479 = vld [vmem:[#allocation8 + $0x14] sm:$0xf]
        %v480 = vld [vmem:[#allocation8 + $0x18] sm:$0xf]
        %v481 = vld [vmem:[#allocation8 + $0x1c] sm:$0xf]
        %v482 = vld [vmem:[#allocation8 + $0x20] sm:$0xf]
        %v483 = vld [vmem:[#allocation8 + $0x24] sm:$0xf]
        %v484 = vld [vmem:[#allocation8 + $0x28] sm:$0xf]
        %v485 = vld [vmem:[#allocation8 + $0x2c] sm:$0xf]
        %v486 = vld [vmem:[#allocation8 + $0x30] sm:$0xf]
        %v487 = vld [vmem:[#allocation8 + $0x34] sm:$0xf]
        %v488 = vld [vmem:[#allocation8 + $0x38] sm:$0xf]
        %v489 = vld [vmem:[#allocation8 + $0x3c] sm:$0xf]
        %v498 = vunpack.c.l.b16 %v466
        %v499 = vunpack.c.l.b16 %v467
        %v500 = vunpack.c.l.b16 %v468
        %v501 = vunpack.c.l.b16 %v469
        %v502 = vunpack.c.l.b16 %v470
        %v503 = vunpack.c.l.b16 %v471
        %v504 = vunpack.c.l.b16 %v472
        %v505 = vunpack.c.l.b16 %v473
        %v506 = vpack.c.b16 %v499, %v498
        %v507 = vpack.c.b16 %v501, %v500
        %v508 = vpack.c.b16 %v503, %v502
        %v509 = vpack.c.b16 %v505, %v504
        %v530 = vunpack.c.l.b16 %v474
        %v531 = vunpack.c.l.b16 %v475
        %v532 = vunpack.c.l.b16 %v476
        %v533 = vunpack.c.l.b16 %v477
        %v534 = vunpack.c.l.b16 %v478
        %v535 = vunpack.c.l.b16 %v479
        %v536 = vunpack.c.l.b16 %v480
        %v537 = vunpack.c.l.b16 %v481
        %v538 = vunpack.c.l.b16 %v482
        %v539 = vunpack.c.l.b16 %v483
        %v540 = vunpack.c.l.b16 %v484
        %v541 = vunpack.c.l.b16 %v485
        %v542 = vunpack.c.l.b16 %v486
        %v543 = vunpack.c.l.b16 %v487
        %v544 = vunpack.c.l.b16 %v488
        %v545 = vunpack.c.l.b16 %v489
        %v546 = vpack.c.b16 %v531, %v530
        %v547 = vpack.c.b16 %v533, %v532
        %v548 = vpack.c.b16 %v535, %v534
        %v549 = vpack.c.b16 %v537, %v536
        %v550 = vpack.c.b16 %v539, %v538
        %v551 = vpack.c.b16 %v541, %v540
        %v552 = vpack.c.b16 %v543, %v542
        %v553 = vpack.c.b16 %v545, %v544
        %562 = vmatprep.subr.bf16.mxu0 0
        %563 = vmatpush1.bf16.msra.mxu0 %v553
        %564 = vmatprep.subr.bf16.mxu0 0
        %565 = vmatpush1.bf16.msra.mxu0 %v552
        %566 = vmatprep.subr.bf16.mxu0 0
        %567 = vmatpush1.bf16.msra.mxu0 %v551
        %568 = vmatprep.subr.bf16.mxu0 0
        %569 = vmatpush1.bf16.msra.mxu0 %v550
        %570 = vmatprep.subr.bf16.mxu0 0
        %571 = vmatpush1.bf16.msra.mxu0 %v549
        %572 = vmatprep.subr.bf16.mxu0 0
        %573 = vmatpush1.bf16.msra.mxu0 %v548
        %574 = vmatprep.subr.bf16.mxu0 0
        %575 = vmatpush1.bf16.msra.mxu0 %v547
        %576 = vmatprep.subr.bf16.mxu0 0
        %577 = vmatpush1.bf16.msra.mxu0 %v546
        %578 = vmatprep.subr.bf16.mxu0 0
        %579 = vmatpush2.bf16.msra.mxu0 0
        %580 = vmatprep.subr.bf16.mxu0 0
        %581 = vmatpush2.bf16.msra.mxu0 0
        %582 = vmatprep.subr.bf16.mxu0 0
        %583 = vmatpush2.bf16.msra.mxu0 0
        %584 = vmatprep.subr.bf16.mxu0 0
        %585 = vmatpush2.bf16.msra.mxu0 0
        %586 = vmatprep.subr.bf16.mxu0 0
        %587 = vmatpush2.bf16.msra.mxu0 0
        %588 = vmatprep.subr.bf16.mxu0 0
        %589 = vmatpush2.bf16.msra.mxu0 0
        %590 = vmatprep.subr.bf16.mxu0 0
        %591 = vmatpush2.bf16.msra.mxu0 0
        %592 = vmatprep.subr.bf16.mxu0 0
        %593 = vmatpush2.bf16.msra.mxu0 0
        %594 = vmatprep.mubr.bf16.mxu0 0
        %595 = vmatmul.mubr.bf16.gmra.mxu0 %v506
        %v596 = vpop.f32.mrf.mxu0
        %v597 = vadd.f32 0.0, %v596
        %v598 = vpop.f32.mrf.mxu0
        %v599 = vpop.f32.mrf.mxu0
        %v600 = vadd.f32 0.0, %v599
        %v601 = vpop.f32.mrf.mxu0
        %602 = vmatprep.mubr.bf16.mxu0 0
        %603 = vmatmul.mubr.bf16.gmra.mxu0 %v507
        %v604 = vpop.f32.mrf.mxu0
        %v605 = vadd.f32 0.0, %v604
        %v606 = vpop.f32.mrf.mxu0
        %v607 = vpop.f32.mrf.mxu0
        %v608 = vadd.f32 0.0, %v607
        %v609 = vpop.f32.mrf.mxu0
        %610 = vmatprep.mubr.bf16.mxu0 0
        %611 = vmatmul.mubr.bf16.gmra.mxu0 %v508
        %v612 = vpop.f32.mrf.mxu0
        %v613 = vadd.f32 0.0, %v612
        %v614 = vpop.f32.mrf.mxu0
        %v615 = vpop.f32.mrf.mxu0
        %v616 = vadd.f32 0.0, %v615
        %v617 = vpop.f32.mrf.mxu0
        %618 = vmatprep.mubr.bf16.mxu0 0
        %619 = vmatmul.mubr.bf16.gmra.mxu0 %v509
        %v620 = vpop.f32.mrf.mxu0
        %v621 = vadd.f32 0.0, %v620
        %v622 = vpop.f32.mrf.mxu0
        %v623 = vpop.f32.mrf.mxu0
        %v624 = vadd.f32 0.0, %v623
        %v625 = vpop.f32.mrf.mxu0
        %626 = vdwg.mxu0
        %v635 = vunpack.c.l.b16 %v442
        %v636 = vunpack.c.l.b16 %v443
        %v637 = vunpack.c.l.b16 %v444
        %v638 = vunpack.c.l.b16 %v445
        %v639 = vunpack.c.l.b16 %v446
        %v640 = vunpack.c.l.b16 %v447
        %v641 = vunpack.c.l.b16 %v448
        %v642 = vunpack.c.l.b16 %v449
        %v643 = vpack.c.b16 %v636, %v635
        %v644 = vpack.c.b16 %v638, %v637
        %v645 = vpack.c.b16 %v640, %v639
        %v646 = vpack.c.b16 %v642, %v641
        %v667 = vunpack.c.l.b16 %v450
        %v668 = vunpack.c.l.b16 %v451
        %v669 = vunpack.c.l.b16 %v452
        %v670 = vunpack.c.l.b16 %v453
        %v671 = vunpack.c.l.b16 %v454
        %v672 = vunpack.c.l.b16 %v455
        %v673 = vunpack.c.l.b16 %v456
        %v674 = vunpack.c.l.b16 %v457
        %v675 = vunpack.c.l.b16 %v458
        %v676 = vunpack.c.l.b16 %v459
        %v677 = vunpack.c.l.b16 %v460
        %v678 = vunpack.c.l.b16 %v461
        %v679 = vunpack.c.l.b16 %v462
        %v680 = vunpack.c.l.b16 %v463
        %v681 = vunpack.c.l.b16 %v464
        %v682 = vunpack.c.l.b16 %v465
        %v683 = vpack.c.b16 %v668, %v667
        %v684 = vpack.c.b16 %v670, %v669
        %v685 = vpack.c.b16 %v672, %v671
        %v686 = vpack.c.b16 %v674, %v673
        %v687 = vpack.c.b16 %v676, %v675
        %v688 = vpack.c.b16 %v678, %v677
        %v689 = vpack.c.b16 %v680, %v679
        %v690 = vpack.c.b16 %v682, %v681
        %699 = vmatprep.subr.bf16.mxu0 0
        %700 = vmatpush1.bf16.msra.mxu0 %v690
        %701 = vmatprep.subr.bf16.mxu0 0
        %702 = vmatpush1.bf16.msra.mxu0 %v689
        %703 = vmatprep.subr.bf16.mxu0 0
        %704 = vmatpush1.bf16.msra.mxu0 %v688
        %705 = vmatprep.subr.bf16.mxu0 0
        %706 = vmatpush1.bf16.msra.mxu0 %v687
        %707 = vmatprep.subr.bf16.mxu0 0
        %708 = vmatpush1.bf16.msra.mxu0 %v686
        %709 = vmatprep.subr.bf16.mxu0 0
        %710 = vmatpush1.bf16.msra.mxu0 %v685
        %711 = vmatprep.subr.bf16.mxu0 0
        %712 = vmatpush1.bf16.msra.mxu0 %v684
        %713 = vmatprep.subr.bf16.mxu0 0
        %714 = vmatpush1.bf16.msra.mxu0 %v683
        %715 = vmatprep.subr.bf16.mxu0 0
        %716 = vmatpush2.bf16.msra.mxu0 0
        %717 = vmatprep.subr.bf16.mxu0 0
        %718 = vmatpush2.bf16.msra.mxu0 0
        %719 = vmatprep.subr.bf16.mxu0 0
        %720 = vmatpush2.bf16.msra.mxu0 0
        %721 = vmatprep.subr.bf16.mxu0 0
        %722 = vmatpush2.bf16.msra.mxu0 0
        %723 = vmatprep.subr.bf16.mxu0 0
        %724 = vmatpush2.bf16.msra.mxu0 0
        %725 = vmatprep.subr.bf16.mxu0 0
        %726 = vmatpush2.bf16.msra.mxu0 0
        %727 = vmatprep.subr.bf16.mxu0 0
        %728 = vmatpush2.bf16.msra.mxu0 0
        %729 = vmatprep.subr.bf16.mxu0 0
        %730 = vmatpush2.bf16.msra.mxu0 0
        %731 = vmatprep.mubr.bf16.mxu0 0
        %732 = vmatmul.mubr.bf16.gmra.mxu0 %v643
        %v733 = vpop.f32.mrf.mxu0
        %v734 = vadd.f32 %v597, %v733
        %v735 = vpop.f32.mrf.mxu0
        %v736 = vpop.f32.mrf.mxu0
        %v737 = vadd.f32 %v600, %v736
        %v738 = vpop.f32.mrf.mxu0
        %739 = vmatprep.mubr.bf16.mxu0 0
        %740 = vmatmul.mubr.bf16.gmra.mxu0 %v644
        %v741 = vpop.f32.mrf.mxu0
        %v742 = vadd.f32 %v605, %v741
        %v743 = vpop.f32.mrf.mxu0
        %v744 = vpop.f32.mrf.mxu0
        %v745 = vadd.f32 %v608, %v744
        %v746 = vpop.f32.mrf.mxu0
        %747 = vmatprep.mubr.bf16.mxu0 0
        %748 = vmatmul.mubr.bf16.gmra.mxu0 %v645
        %v749 = vpop.f32.mrf.mxu0
        %v750 = vadd.f32 %v613, %v749
        %v751 = vpop.f32.mrf.mxu0
        %v752 = vpop.f32.mrf.mxu0
        %v753 = vadd.f32 %v616, %v752
        %v754 = vpop.f32.mrf.mxu0
        %755 = vmatprep.mubr.bf16.mxu0 0
        %756 = vmatmul.mubr.bf16.gmra.mxu0 %v646
        %v757 = vpop.f32.mrf.mxu0
        %v758 = vadd.f32 %v621, %v757
        %v759 = vpop.f32.mrf.mxu0
        %v760 = vpop.f32.mrf.mxu0
        %v761 = vadd.f32 %v624, %v760
        %v762 = vpop.f32.mrf.mxu0
        %763 = vdwg.mxu0
        %v764 = vld [vmem:[%s4] sm:$0x1]
        %v766 = vlaneseq
        %v767 = vshrl.u32 %v766, 7
        %v768 = vsub.s32 0, %v767
        %v769 = vrot.slane %v764, %v768
        %v771 = vadd.f32 %v734, %v769
        %v772 = vadd.f32 %v737, %v769
        %v773 = vadd.f32 %v742, %v769
        %v774 = vadd.f32 %v745, %v769
        %v775 = vadd.f32 %v750, %v769
        %v776 = vadd.f32 %v753, %v769
        %v777 = vadd.f32 %v758, %v769
        %v778 = vadd.f32 %v761, %v769
        %v779 = vpack.c.bf16 %v772, %v771
        %v780 = vpack.c.bf16 %v774, %v773
        %v781 = vpack.c.bf16 %v776, %v775
        %v782 = vpack.c.bf16 %v778, %v777
        %v783 = vld [vmem:[#allocation10] sm:$0xf]
        %v784 = vld [vmem:[#allocation10 + $0x4] sm:$0xf]
        %v785 = vld [vmem:[#allocation10 + $0x8] sm:$0xf]
        %v786 = vld [vmem:[#allocation10 + $0xc] sm:$0xf]
        %v787 = vld [vmem:[#allocation10 + $0x10] sm:$0xf]
        %v788 = vld [vmem:[#allocation10 + $0x14] sm:$0xf]
        %v789 = vld [vmem:[#allocation10 + $0x18] sm:$0xf]
        %v790 = vld [vmem:[#allocation10 + $0x1c] sm:$0xf]
        %v791 = vld [vmem:[#allocation10 + $0x20] sm:$0xf]
        %v792 = vld [vmem:[#allocation10 + $0x24] sm:$0xf]
        %v793 = vld [vmem:[#allocation10 + $0x28] sm:$0xf]
        %v794 = vld [vmem:[#allocation10 + $0x2c] sm:$0xf]
        %v795 = vld [vmem:[#allocation10 + $0x30] sm:$0xf]
        %v796 = vld [vmem:[#allocation10 + $0x34] sm:$0xf]
        %v797 = vld [vmem:[#allocation10 + $0x38] sm:$0xf]
        %v798 = vld [vmem:[#allocation10 + $0x3c] sm:$0xf]
        %v799 = vld [vmem:[%s6] sm:$0x1]
        %v801 = vlaneseq
        %v802 = vshrl.u32 %v801, 7
        %v803 = vsub.s32 0, %v802
        %v804 = vrot.slane %v799, %v803
        %v822 = vunpack.c.l.b16 %v783
        %v823 = vunpack.c.l.b16 %v784
        %v824 = vunpack.c.l.b16 %v785
        %v825 = vunpack.c.l.b16 %v786
        %v826 = vunpack.c.l.b16 %v787
        %v827 = vunpack.c.l.b16 %v788
        %v828 = vunpack.c.l.b16 %v789
        %v829 = vunpack.c.l.b16 %v790
        %v830 = vunpack.c.l.b16 %v791
        %v831 = vunpack.c.l.b16 %v792
        %v832 = vunpack.c.l.b16 %v793
        %v833 = vunpack.c.l.b16 %v794
        %v834 = vunpack.c.l.b16 %v795
        %v835 = vunpack.c.l.b16 %v796
        %v836 = vunpack.c.l.b16 %v797
        %v837 = vunpack.c.l.b16 %v798
        %v838 = vpack.c.b16 %v823, %v822
        %v839 = vpack.c.b16 %v825, %v824
        %v840 = vpack.c.b16 %v827, %v826
        %v841 = vpack.c.b16 %v829, %v828
        %v842 = vpack.c.b16 %v831, %v830
        %v843 = vpack.c.b16 %v833, %v832
        %v844 = vpack.c.b16 %v835, %v834
        %v845 = vpack.c.b16 %v837, %v836
        %854 = vmatprep.subr.bf16.mxu0 0
        %855 = vmatpush1.bf16.msra.mxu0 %v845
        %856 = vmatprep.subr.bf16.mxu0 0
        %857 = vmatpush1.bf16.msra.mxu0 %v844
        %858 = vmatprep.subr.bf16.mxu0 0
        %859 = vmatpush1.bf16.msra.mxu0 %v843
        %860 = vmatprep.subr.bf16.mxu0 0
        %861 = vmatpush1.bf16.msra.mxu0 %v842
        %862 = vmatprep.subr.bf16.mxu0 0
        %863 = vmatpush1.bf16.msra.mxu0 %v841
        %864 = vmatprep.subr.bf16.mxu0 0
        %865 = vmatpush1.bf16.msra.mxu0 %v840
        %866 = vmatprep.subr.bf16.mxu0 0
        %867 = vmatpush1.bf16.msra.mxu0 %v839
        %868 = vmatprep.subr.bf16.mxu0 0
        %869 = vmatpush1.bf16.msra.mxu0 %v838
        %870 = vmatprep.subr.bf16.mxu0 0
        %871 = vmatpush2.bf16.msra.mxu0 0
        %872 = vmatprep.subr.bf16.mxu0 0
        %873 = vmatpush2.bf16.msra.mxu0 0
        %874 = vmatprep.subr.bf16.mxu0 0
        %875 = vmatpush2.bf16.msra.mxu0 0
        %876 = vmatprep.subr.bf16.mxu0 0
        %877 = vmatpush2.bf16.msra.mxu0 0
        %878 = vmatprep.subr.bf16.mxu0 0
        %879 = vmatpush2.bf16.msra.mxu0 0
        %880 = vmatprep.subr.bf16.mxu0 0
        %881 = vmatpush2.bf16.msra.mxu0 0
        %882 = vmatprep.subr.bf16.mxu0 0
        %883 = vmatpush2.bf16.msra.mxu0 0
        %884 = vmatprep.subr.bf16.mxu0 0
        %885 = vmatpush2.bf16.msra.mxu0 0
        %886 = vmatprep.mubr.bf16.mxu0 0
        %887 = vmatmul.mubr.bf16.gmra.mxu0 %v779
        %v888 = vpop.f32.mrf.mxu0
        %v889 = vadd.f32 %v804, %v888
        %v890 = vpop.f32.mrf.mxu0
        %v891 = vpop.f32.mrf.mxu0
        %v892 = vadd.f32 %v804, %v891
        %v893 = vpop.f32.mrf.mxu0
        %894 = vmatprep.mubr.bf16.mxu0 0
        %895 = vmatmul.mubr.bf16.gmra.mxu0 %v780
        %v896 = vpop.f32.mrf.mxu0
        %v897 = vadd.f32 %v804, %v896
        %v898 = vpop.f32.mrf.mxu0
        %v899 = vpop.f32.mrf.mxu0
        %v900 = vadd.f32 %v804, %v899
        %v901 = vpop.f32.mrf.mxu0
        %902 = vmatprep.mubr.bf16.mxu0 0
        %903 = vmatmul.mubr.bf16.gmra.mxu0 %v781
        %v904 = vpop.f32.mrf.mxu0
        %v905 = vadd.f32 %v804, %v904
        %v906 = vpop.f32.mrf.mxu0
        %v907 = vpop.f32.mrf.mxu0
        %v908 = vadd.f32 %v804, %v907
        %v909 = vpop.f32.mrf.mxu0
        %910 = vmatprep.mubr.bf16.mxu0 0
        %911 = vmatmul.mubr.bf16.gmra.mxu0 %v782
        %v912 = vpop.f32.mrf.mxu0
        %v913 = vadd.f32 %v804, %v912
        %v914 = vpop.f32.mrf.mxu0
        %v915 = vpop.f32.mrf.mxu0
        %v916 = vadd.f32 %v804, %v915
        %v917 = vpop.f32.mrf.mxu0
        %918 = vdwg.mxu0
        %v919 = vmax.f32 %v889, 0.0
        %v920 = vmax.f32 %v892, 0.0
        %v921 = vmax.f32 %v897, 0.0
        %v922 = vmax.f32 %v900, 0.0
        %v923 = vmax.f32 %v905, 0.0
        %v924 = vmax.f32 %v908, 0.0
        %v925 = vmax.f32 %v913, 0.0
        %v926 = vmax.f32 %v916, 0.0
        %v927 = vadd.f32 %v919, %v771
        %v928 = vadd.f32 %v920, %v772
        %v929 = vadd.f32 %v921, %v773
        %v930 = vadd.f32 %v922, %v774
        %v931 = vadd.f32 %v923, %v775
        %v932 = vadd.f32 %v924, %v776
        %v933 = vadd.f32 %v925, %v777
        %v934 = vadd.f32 %v926, %v778
        %v935 = vld [vmem:[%s7] sm:$0x1]
        %v937 = vlaneseq
        %v938 = vshrl.u32 %v937, 7
        %v939 = vsub.s32 0, %v938
        %v940 = vrot.slane %v935, %v939
        %v942 = vmul.f32 %v927, %v940
        %v943 = vmul.f32 %v928, %v940
        %v944 = vmul.f32 %v929, %v940
        %v945 = vmul.f32 %v930, %v940
        %v946 = vmul.f32 %v931, %v940
        %v947 = vmul.f32 %v932, %v940
        %v948 = vmul.f32 %v933, %v940
        %v949 = vmul.f32 %v934, %v940
        %950 = vadd.xlane.f32.xlu0 %v942
        %v951 = vpop.xlane.xlu0 %950
        %952 = vadd.xlane.f32.xlu0 %v943
        %v953 = vpop.xlane.xlu0 %952
        %954 = vadd.xlane.f32.xlu0 %v944
        %v955 = vpop.xlane.xlu0 %954
        %956 = vadd.xlane.f32.xlu0 %v945
        %v957 = vpop.xlane.xlu0 %956
        %958 = vadd.xlane.f32.xlu0 %v946
        %v959 = vpop.xlane.xlu0 %958
        %960 = vadd.xlane.f32.xlu0 %v947
        %v961 = vpop.xlane.xlu0 %960
        %962 = vadd.xlane.f32.xlu0 %v948
        %v963 = vpop.xlane.xlu0 %962
        %964 = vadd.xlane.f32.xlu0 %v949
        %v965 = vpop.xlane.xlu0 %964
        %v966 = vld [vmem:[#allocation2] sm:$0x1]
        %v968 = vlaneseq
        %v969 = vshrl.u32 %v968, 7
        %v970 = vsub.s32 0, %v969
        %v971 = vrot.slane %v966, %v970
        %v973 = vadd.f32 %v951, %v971
        %v974 = vadd.f32 %v953, %v971
        %v975 = vadd.f32 %v955, %v971
        %v976 = vadd.f32 %v957, %v971
        %v977 = vadd.f32 %v959, %v971
        %v978 = vadd.f32 %v961, %v971
        %v979 = vadd.f32 %v963, %v971
        %v980 = vadd.f32 %v965, %v971
        %v981 = vxor.u32 %v973, 2147483648
        %v982 = vxor.u32 %v974, 2147483648
        %v983 = vxor.u32 %v975, 2147483648
        %v984 = vxor.u32 %v976, 2147483648
        %v985 = vxor.u32 %v977, 2147483648
        %v986 = vxor.u32 %v978, 2147483648
        %v987 = vxor.u32 %v979, 2147483648
        %v988 = vxor.u32 %v980, 2147483648
        %v989 = vmul.f32 %v981, 1.442695
        %v990 = vpow.pop %v989
        %v991 = vmul.f32 %v982, 1.442695
        %v992 = vpow.pop %v991
        %v993 = vmul.f32 %v983, 1.442695
        %v994 = vpow.pop %v993
        %v995 = vmul.f32 %v984, 1.442695
        %v996 = vpow.pop %v995
        %v997 = vmul.f32 %v985, 1.442695
        %v998 = vpow.pop %v997
        %v999 = vmul.f32 %v986, 1.442695
        %v1000 = vpow.pop %v999
        %v1001 = vmul.f32 %v987, 1.442695
        %v1002 = vpow.pop %v1001
        %v1003 = vmul.f32 %v988, 1.442695
        %v1004 = vpow.pop %v1003
        %v1005 = vadd.f32 %v990, 1.0
        %v1006 = vadd.f32 %v992, 1.0
        %v1007 = vadd.f32 %v994, 1.0
        %v1008 = vadd.f32 %v996, 1.0
        %v1009 = vadd.f32 %v998, 1.0
        %v1010 = vadd.f32 %v1000, 1.0
        %v1011 = vadd.f32 %v1002, 1.0
        %v1012 = vadd.f32 %v1004, 1.0
        %v1013 = vrcp.pop %v1005
        %v1014 = vmul.f32 1.0, %v1013
        %v1015 = vrcp.pop %v1006
        %v1016 = vmul.f32 1.0, %v1015
        %v1017 = vrcp.pop %v1007
        %v1018 = vmul.f32 1.0, %v1017
        %v1019 = vrcp.pop %v1008
        %v1020 = vmul.f32 1.0, %v1019
        %v1021 = vrcp.pop %v1009
        %v1022 = vmul.f32 1.0, %v1021
        %v1023 = vrcp.pop %v1010
        %v1024 = vmul.f32 1.0, %v1023
        %v1025 = vrcp.pop %v1011
        %v1026 = vmul.f32 1.0, %v1025
        %v1027 = vrcp.pop %v1012
        %v1028 = vmul.f32 1.0, %v1027
        %v1029 = vmul.f32 %v1014, 3.0
        %v1030 = vmul.f32 %v1016, 3.0
        %v1031 = vmul.f32 %v1018, 3.0
        %v1032 = vmul.f32 %v1020, 3.0
        %v1033 = vmul.f32 %v1022, 3.0
        %v1034 = vmul.f32 %v1024, 3.0
        %v1035 = vmul.f32 %v1026, 3.0
        %v1036 = vmul.f32 %v1028, 3.0
        %vm1037 = vcmask 7168
        %1038 = vst.msk [vmem:[%s439] sm:$0xff] %vm1037, %v1029
        %1039 = vst.msk [vmem:[%s439 + $0x8] sm:$0xff] %vm1037, %v1030
        %1040 = vst.msk [vmem:[%s439 + $0x10] sm:$0xff] %vm1037, %v1031
        %1041 = vst.msk [vmem:[%s439 + $0x18] sm:$0xff] %vm1037, %v1032
        %1042 = vst.msk [vmem:[%s439 + $0x20] sm:$0xff] %vm1037, %v1033
        %1043 = vst.msk [vmem:[%s439 + $0x28] sm:$0xff] %vm1037, %v1034
        %1044 = vst.msk [vmem:[%s439 + $0x30] sm:$0xff] %vm1037, %v1035
        %1045 = vst.msk [vmem:[%s439 + $0x38] sm:$0xff] %vm1037, %v1036
        %s1046 = smul.u32 8, %s29
        %p1047 = scmp.lt.s32.totalorder %s1046, 15
        %s1048 = scalar_select %p1047, %s1046, 15
        %s1049 = smul.addr %s1048, 8
        %s1050 = scalar_lea.vmem %s9, %s1049
        // Predicated region
        $region77: #{tpu_custom_call.1} parent=55 // pred_check
          %p1051 = pneg %p246
        $region78: #{tpu_custom_call.1} parent=55 // pred_check_branch
          %1053 = sbr.rel (%p1051) target = $region80
        $region79: #{tpu_custom_call.1} parent=55 // pred_region
          %s1054 = smul.u32 8, %s29
        $region80: #{tpu_custom_call.1} parent=55 // pred_fallthru
          _
      $region56: #{tpu_custom_call.1} parent=5 // pred_fallthru
        _
      %p1055 = scmp.le.s32.totalorder 2, %s24
      // Predicated region
      $region81: #{tpu_custom_call.1} parent=5 // pred_check
        %p1056 = pneg %p1055
      $region82: #{tpu_custom_call.1} parent=5 // pred_check_branch
        %1058 = sbr.rel (%p1056) target = $region84
      $region83: #{tpu_custom_call.1} parent=5 // pred_region
        %s1059 = ssub.s32 %s24, 2
        // Predicated region
        $region85: #{tpu_custom_call.1} parent=83 // pred_check
          %p1060 = pneg %p252
        $region86: #{tpu_custom_call.1} parent=83 // pred_check_branch
          %1062 = sbr.rel (%p1060) target = $region88
        $region87: #{tpu_custom_call.1} parent=83 // pred_region
          %s1063 = smul.u32 8, %s30
          %p1064 = scmp.lt.s32.totalorder %s1063, 15
          %s1065 = scalar_select %p1064, %s1063, 15
          %s1066 = smul.addr %s1065, 8
          %s1067 = scalar_lea.vmem %s9, %s1066
        $region88: #{tpu_custom_call.1} parent=83 // pred_fallthru
          _
      $region84: #{tpu_custom_call.1} parent=5 // pred_fallthru
        _
    $region6: #{tpu_custom_call.1} parent=1 // loop_footer
      %s28 = sadd.s32 1, %s24
    $region7: #{tpu_custom_call.1} parent=1 // loop_footer_branch
      %23 = sbr.rel target = $region3
    $region8: #{tpu_custom_call.1} parent=1 // loop_exit
      _
    %1068 = vsyncpa [#allocation4], 1
    %s1069 = scalar_lea.sflag [#allocation4], 1
    %1070 = vsyncpa %s1069, 1
    %1071 = vsyncpa [#allocation6], 1
    %s1072 = scalar_lea.sflag [#allocation6], 1
    %1073 = vsyncpa %s1072, 1
    %1074 = vsyncpa [#allocation9], 1

</llo_original>
